<compile_context>
chip_gen: v7x
topology: tpu7x:2x2x1
jax: 0.10.0
libtpu: 0.0.40
codegen_flags: <defaults>
</compile_context>

<pallas_src>
import functools
import math

import jax
import jax.numpy as jnp
from jax.experimental import pallas as pl
from jax.experimental.pallas import tpu as pltpu


# ----------------------------- fused Pallas kernel ---------------------------

def _build_fused_kernel(T, B, I, H, n_layers):
    """Fused forward: n_layers stacked LSTM layers + view-select + linear head.

    T = batch (LSTM time axis), B = seq_len (LSTM batch axis), I = n_features,
    H = n_hidden.  All sizes are static Python ints baked into the kernel.
    """

    def kernel(*refs):
        x_ref = refs[0]                                    # (T*B, I)
        layer_refs = refs[1:1 + 3 * n_layers]              # per layer: W_ih^T (in,4H), W_hh^T (H,4H), bias (1,4H)
        lin_w_ref = refs[1 + 3 * n_layers]                 # (1, H)
        lin_b_ref = refs[2 + 3 * n_layers]                 # (1, 1)
        out_ref = refs[3 + 3 * n_layers]                   # (T, 1)
        proj_scr = refs[4 + 3 * n_layers]                  # (T*B, 4H) hoisted input projection
        seq_scr = refs[5 + 3 * n_layers]                   # (T*B, H)  layer output sequence (reused per layer)

        # Loop-invariant lane mask: lanes [2H, 3H) are the `g` gate (tanh),
        # everything else sigmoid.  Hoisted (no per-iteration broadcasts).
        lane = jax.lax.broadcasted_iota(jnp.int32, (B, 4 * H), 1)
        g_mask = (lane >= 2 * H) & (lane < 3 * H)

        # First timestep whose rows survive the view(seq_len,batch,H)[-1] select.
        first_needed_t = ((B - 1) * T) // B

        for layer in range(n_layers):
            wih_t = layer_refs[3 * layer][...]             # (in, 4H)
            whh_t = layer_refs[3 * layer + 1][...]         # (H, 4H)
            bias = layer_refs[3 * layer + 2][...]          # (1, 4H)
            last_layer = layer == n_layers - 1

            # Hoisted input projection: one big matmul instead of T small ones
            # inside the serial recurrence.
            layer_in = x_ref[...] if layer == 0 else seq_scr[...]
            proj_scr[...] = (
                jnp.dot(layer_in, wih_t, preferred_element_type=jnp.float32) + bias
            )

            h = jnp.zeros((B, H), jnp.float32)
            c = jnp.zeros((B, H), jnp.float32)
            # T (= batch) is small and static here; for large T switch to
            # lax.fori_loop(..., unroll=True) with pl.ds(t*B, B) slices.
            for t in range(T):
                gates = proj_scr[t * B:(t + 1) * B, :] + jnp.dot(
                    h, whh_t, preferred_element_type=jnp.float32)      # (B, 4H)
                # Full-vreg EUP passes + a single select, PyTorch gate order i,f,g,o.
                act = jnp.where(g_mask, jnp.tanh(gates), jax.nn.sigmoid(gates))
                i_g = act[:, 0 * H:1 * H]
                f_g = act[:, 1 * H:2 * H]
                g_g = act[:, 2 * H:3 * H]
                o_g = act[:, 3 * H:4 * H]
                c = f_g * c + i_g * g_g
                h = o_g * jnp.tanh(c)
                # Intermediate layers need the whole sequence (next layer's
                # hoisted projection); the last layer only needs the rows the
                # view-select actually consumes.
                if (not last_layer) or t >= first_needed_t:
                    seq_scr[t * B:(t + 1) * B, :] = h

            # TODO(synk): inter-layer dropout(p=0.75) fires only in train mode;
            # eval-mode (identity) semantics are implemented here.

        # last_time_step = lstm_out.view(seq_len, batch, H)[-1]
        #   == flat rows [(B-1)*T, B*T) of the row-major (T*B, H) output.
        last = seq_scr[(B - 1) * T:B * T, :]                            # (T, H)
        # Linear head on the VPU/XLU (an N=1 matmul would waste the MXU).
        out_ref[...] = (
            jnp.sum(last * lin_w_ref[...], axis=-1, keepdims=True) + lin_b_ref[...]
        )

    return kernel


# ------------------------------ JAX wrapper -----------------------------------

@functools.partial(jax.jit, static_argnames=("n_hidden", "seq_len", "n_layers"))
def crypto_predictor_forward(params, sequences, *, n_hidden, seq_len, n_layers=2):
    """Reproduces CryptoPredictor.forward after reset_hidden_state() (eval mode)."""
    batch = sequences.shape[0]
    T, B, H = batch, seq_len, n_hidden
    # sequences.view(len(sequences), seq_len, -1), pre-flattened for the kernel.
    x_flat = sequences.reshape(T * B, -1).astype(jnp.float32)           # (T*B, I)
    I = x_flat.shape[1]

    inputs = [x_flat]
    for layer in range(n_layers):
        inputs += [
            params[f"wih_t_l{layer}"],
            params[f"whh_t_l{layer}"],
            params[f"bias_l{layer}"],
        ]
    inputs += [params["lin_w"], params["lin_b"]]

    vmem = pl.BlockSpec(memory_space=pltpu.MemorySpace.VMEM)
    return pl.pallas_call(
        _build_fused_kernel(T, B, I, H, n_layers),
        out_shape=jax.ShapeDtypeStruct((T, 1), jnp.float32),
        in_specs=[vmem] * len(inputs),
        out_specs=vmem,
        scratch_shapes=[
            pltpu.VMEM((T * B, 4 * H), jnp.float32),   # hoisted input projection
            pltpu.VMEM((T * B, H), jnp.float32),       # per-layer hidden sequence
        ],
    )(*inputs)


# --------------------------- parameter construction ---------------------------

def init_params(key, n_features, n_hidden, n_layers):
    """PyTorch-style uniform(-1/sqrt(H), 1/sqrt(H)) init, stored kernel-ready.

    Transposed weights and fused biases are precomputed ONCE here so the
    forward pass launches exactly one pallas_call and nothing else.
    """
    k = 1.0 / math.sqrt(n_hidden)
    params = {}
    keys = jax.random.split(key, 4 * n_layers + 2)
    idx = 0
    for layer in range(n_layers):
        in_size = n_features if layer == 0 else n_hidden
        w_ih = jax.random.uniform(keys[idx], (4 * n_hidden, in_size), jnp.float32, -k, k); idx += 1
        w_hh = jax.random.uniform(keys[idx], (4 * n_hidden, n_hidden), jnp.float32, -k, k); idx += 1
        b_ih = jax.random.uniform(keys[idx], (4 * n_hidden,), jnp.float32, -k, k); idx += 1
        b_hh = jax.random.uniform(keys[idx], (4 * n_hidden,), jnp.float32, -k, k); idx += 1
        params[f"wih_t_l{layer}"] = jnp.transpose(w_ih)                    # (in, 4H)
        params[f"whh_t_l{layer}"] = jnp.transpose(w_hh)                    # (H, 4H)
        params[f"bias_l{layer}"] = (b_ih + b_hh).reshape(1, 4 * n_hidden)  # (1, 4H)
    params["lin_w"] = jax.random.uniform(
        keys[idx], (1, n_hidden), jnp.float32, -k, k); idx += 1
    params["lin_b"] = jax.random.uniform(
        keys[idx], (1,), jnp.float32, -k, k).reshape(1, 1)
    return params


# ----------------------------------- main --------------------------------------

if __name__ == "__main__":
    n_features, n_hidden, seq_len, n_layers = 4, 32, 8, 2
    batch = 2

    root = jax.random.PRNGKey(0)
    k_data, k_params = jax.random.split(root)

    sequences = jax.random.normal(k_data, (batch, seq_len, n_features), jnp.float32)
    params = init_params(k_params, n_features, n_hidden, n_layers)

    y = crypto_predictor_forward(
        params, sequences, n_hidden=n_hidden, seq_len=seq_len, n_layers=n_layers
    )
    y = jax.block_until_ready(y)
    assert y.shape == (batch, 1) and y.dtype == jnp.float32
    assert bool(jnp.all(jnp.isfinite(y)))
    print("KERNEL_OK")
</pallas_src>

<mosaic_0001>
module attributes {stable_mosaic.version = 11 : i64} {
  func.func @kernel(%arg0: memref<16x4xf32, #tpu.memory_space<vmem>>, %arg1: memref<4x128xf32, #tpu.memory_space<vmem>>, %arg2: memref<32x128xf32, #tpu.memory_space<vmem>>, %arg3: memref<1x128xf32, #tpu.memory_space<vmem>>, %arg4: memref<32x128xf32, #tpu.memory_space<vmem>>, %arg5: memref<32x128xf32, #tpu.memory_space<vmem>>, %arg6: memref<1x128xf32, #tpu.memory_space<vmem>>, %arg7: memref<1x32xf32, #tpu.memory_space<vmem>>, %arg8: memref<1x1xf32, #tpu.memory_space<vmem>>, %arg9: memref<2x1xf32, #tpu.memory_space<vmem>>, %arg10: memref<16x128xf32, #tpu.memory_space<vmem>>, %arg11: memref<16x32xf32, #tpu.memory_space<vmem>>) attributes {dimension_semantics = [], scalar_prefetch = 0 : i64, scratch_operands = 2 : i64, tpu.core_type = #tpu.core_type<tc>} {
    %0 = tpu.iota {dimensions = array<i32: 1>} : vector<8x128xi32>
    %c64_i32 = arith.constant 64 : i32
    %1 = vector.broadcast %c64_i32 : i32 to vector<8x128xi32>
    %2 = arith.cmpi sge, %0, %1 : vector<8x128xi32>
    %c96_i32 = arith.constant 96 : i32
    %3 = vector.broadcast %c96_i32 : i32 to vector<8x128xi32>
    %4 = arith.cmpi slt, %0, %3 : vector<8x128xi32>
    %5 = arith.andi %2, %4 : vector<8x128xi1>
    %c0 = arith.constant 0 : index
    %c0_0 = arith.constant 0 : index
    %6 = vector.load %arg1[%c0, %c0_0] : memref<4x128xf32, #tpu.memory_space<vmem>>, vector<4x128xf32>
    %c0_1 = arith.constant 0 : index
    %c0_2 = arith.constant 0 : index
    %7 = vector.load %arg2[%c0_1, %c0_2] : memref<32x128xf32, #tpu.memory_space<vmem>>, vector<32x128xf32>
    %c0_3 = arith.constant 0 : index
    %c0_4 = arith.constant 0 : index
    %8 = vector.load %arg3[%c0_3, %c0_4] : memref<1x128xf32, #tpu.memory_space<vmem>>, vector<1x128xf32>
    %c0_5 = arith.constant 0 : index
    %c0_6 = arith.constant 0 : index
    %9 = vector.load %arg0[%c0_5, %c0_6] : memref<16x4xf32, #tpu.memory_space<vmem>>, vector<16x4xf32>
    %cst = arith.constant dense<0.000000e+00> : vector<16x128xf32>
    %10 = tpu.matmul %9, %6, %cst {dimension_numbers = #tpu.dot_dimension_numbers<[1], [0], [0], [1], [0, 0, 1, 1], [], []>} : vector<16x4xf32>, vector<4x128xf32>, vector<16x128xf32> -> vector<16x128xf32>
    %11 = vector.broadcast %8 : vector<1x128xf32> to vector<16x128xf32>
    %12 = arith.addf %10, %11 : vector<16x128xf32>
    %c0_7 = arith.constant 0 : index
    %c0_8 = arith.constant 0 : index
    %13 = vector.load %arg10[%c0_7, %c0_8] : memref<16x128xf32, #tpu.memory_space<vmem>>, vector<16x128xf32>
    tpu.vector_store %arg10[%c0_7, %c0_8], %12 {strides = array<i32>} : memref<16x128xf32, #tpu.memory_space<vmem>>, vector<16x128xf32>,
    %cst_9 = arith.constant 0.000000e+00 : f32
    %14 = vector.broadcast %cst_9 : f32 to vector<8x32xf32>
    %cst_10 = arith.constant 0.000000e+00 : f32
    %15 = vector.broadcast %cst_10 : f32 to vector<8x32xf32>
    %c0_11 = arith.constant 0 : index
    %c0_12 = arith.constant 0 : index
    %16 = vector.load %arg10[%c0_11, %c0_12] : memref<16x128xf32, #tpu.memory_space<vmem>>, vector<8x128xf32>
    %cst_13 = arith.constant dense<0.000000e+00> : vector<8x128xf32>
    %17 = tpu.matmul %14, %7, %cst_13 {dimension_numbers = #tpu.dot_dimension_numbers<[1], [0], [0], [1], [0, 0, 1, 1], [], []>} : vector<8x32xf32>, vector<32x128xf32>, vector<8x128xf32> -> vector<8x128xf32>
    %18 = arith.addf %16, %17 : vector<8x128xf32>
    %19 = math.tanh %18 : vector<8x128xf32>
    %20 = arith.negf %18 : vector<8x128xf32>
    %21 = math.exp %20 : vector<8x128xf32>
    %cst_14 = arith.constant 1.000000e+00 : f32
    %22 = vector.broadcast %cst_14 : f32 to vector<8x128xf32>
    %23 = arith.addf %22, %21 : vector<8x128xf32>
    %24 = arith.divf %22, %23 : vector<8x128xf32>
    %25 = arith.select %5, %19, %24 : vector<8x128xi1>, vector<8x128xf32>
    %26 = vector.extract_strided_slice %25 {offsets = [0, 0], sizes = [8, 32], strides = [1, 1]} : vector<8x128xf32> to vector<8x32xf32>
    %27 = vector.extract_strided_slice %25 {offsets = [0, 32], sizes = [8, 32], strides = [1, 1]} : vector<8x128xf32> to vector<8x32xf32>
    %28 = vector.extract_strided_slice %25 {offsets = [0, 64], sizes = [8, 32], strides = [1, 1]} : vector<8x128xf32> to vector<8x32xf32>
    %29 = vector.extract_strided_slice %25 {offsets = [0, 96], sizes = [8, 32], strides = [1, 1]} : vector<8x128xf32> to vector<8x32xf32>
    %30 = arith.mulf %27, %15 : vector<8x32xf32>
    %31 = arith.mulf %26, %28 : vector<8x32xf32>
    %32 = arith.addf %30, %31 : vector<8x32xf32>
    %33 = math.tanh %32 : vector<8x32xf32>
    %34 = arith.mulf %29, %33 : vector<8x32xf32>
    %c0_15 = arith.constant 0 : index
    %c0_16 = arith.constant 0 : index
    %35 = vector.load %arg11[%c0_15, %c0_16] : memref<16x32xf32, #tpu.memory_space<vmem>>, vector<8x32xf32>
    tpu.vector_store %arg11[%c0_15, %c0_16], %34 {strides = array<i32>} : memref<16x32xf32, #tpu.memory_space<vmem>>, vector<8x32xf32>,
    %c8 = arith.constant 8 : index
    %c0_17 = arith.constant 0 : index
    %36 = vector.load %arg10[%c8, %c0_17] : memref<16x128xf32, #tpu.memory_space<vmem>>, vector<8x128xf32>
    %cst_18 = arith.constant dense<0.000000e+00> : vector<8x128xf32>
    %37 = tpu.matmul %34, %7, %cst_18 {dimension_numbers = #tpu.dot_dimension_numbers<[1], [0], [0], [1], [0, 0, 1, 1], [], []>} : vector<8x32xf32>, vector<32x128xf32>, vector<8x128xf32> -> vector<8x128xf32>
    %38 = arith.addf %36, %37 : vector<8x128xf32>
    %39 = math.tanh %38 : vector<8x128xf32>
    %40 = arith.negf %38 : vector<8x128xf32>
    %41 = math.exp %40 : vector<8x128xf32>
    %cst_19 = arith.constant 1.000000e+00 : f32
    %42 = vector.broadcast %cst_19 : f32 to vector<8x128xf32>
    %43 = arith.addf %42, %41 : vector<8x128xf32>
    %44 = arith.divf %42, %43 : vector<8x128xf32>
    %45 = arith.select %5, %39, %44 : vector<8x128xi1>, vector<8x128xf32>
    %46 = vector.extract_strided_slice %45 {offsets = [0, 0], sizes = [8, 32], strides = [1, 1]} : vector<8x128xf32> to vector<8x32xf32>
    %47 = vector.extract_strided_slice %45 {offsets = [0, 32], sizes = [8, 32], strides = [1, 1]} : vector<8x128xf32> to vector<8x32xf32>
    %48 = vector.extract_strided_slice %45 {offsets = [0, 64], sizes = [8, 32], strides = [1, 1]} : vector<8x128xf32> to vector<8x32xf32>
    %49 = vector.extract_strided_slice %45 {offsets = [0, 96], sizes = [8, 32], strides = [1, 1]} : vector<8x128xf32> to vector<8x32xf32>
    %50 = arith.mulf %47, %32 : vector<8x32xf32>
    %51 = arith.mulf %46, %48 : vector<8x32xf32>
    %52 = arith.addf %50, %51 : vector<8x32xf32>
    %53 = math.tanh %52 : vector<8x32xf32>
    %54 = arith.mulf %49, %53 : vector<8x32xf32>
    %c8_20 = arith.constant 8 : index
    %c0_21 = arith.constant 0 : index
    %55 = vector.load %arg11[%c8_20, %c0_21] : memref<16x32xf32, #tpu.memory_space<vmem>>, vector<8x32xf32>
    tpu.vector_store %arg11[%c8_20, %c0_21], %54 {strides = array<i32>} : memref<16x32xf32, #tpu.memory_space<vmem>>, vector<8x32xf32>,
    %c0_22 = arith.constant 0 : index
    %c0_23 = arith.constant 0 : index
    %56 = vector.load %arg4[%c0_22, %c0_23] : memref<32x128xf32, #tpu.memory_space<vmem>>, vector<32x128xf32>
    %c0_24 = arith.constant 0 : index
    %c0_25 = arith.constant 0 : index
    %57 = vector.load %arg5[%c0_24, %c0_25] : memref<32x128xf32, #tpu.memory_space<vmem>>, vector<32x128xf32>
    %c0_26 = arith.constant 0 : index
    %c0_27 = arith.constant 0 : index
    %58 = vector.load %arg6[%c0_26, %c0_27] : memref<1x128xf32, #tpu.memory_space<vmem>>, vector<1x128xf32>
    %c0_28 = arith.constant 0 : index
    %c0_29 = arith.constant 0 : index
    %59 = vector.load %arg11[%c0_28, %c0_29] : memref<16x32xf32, #tpu.memory_space<vmem>>, vector<16x32xf32>
    %cst_30 = arith.constant dense<0.000000e+00> : vector<16x128xf32>
    %60 = tpu.matmul %59, %56, %cst_30 {dimension_numbers = #tpu.dot_dimension_numbers<[1], [0], [0], [1], [0, 0, 1, 1], [], []>} : vector<16x32xf32>, vector<32x128xf32>, vector<16x128xf32> -> vector<16x128xf32>
    %61 = vector.broadcast %58 : vector<1x128xf32> to vector<16x128xf32>
    %62 = arith.addf %60, %61 : vector<16x128xf32>
    %c0_31 = arith.constant 0 : index
    %c0_32 = arith.constant 0 : index
    %63 = vector.load %arg10[%c0_31, %c0_32] : memref<16x128xf32, #tpu.memory_space<vmem>>, vector<16x128xf32>
    tpu.vector_store %arg10[%c0_31, %c0_32], %62 {strides = array<i32>} : memref<16x128xf32, #tpu.memory_space<vmem>>, vector<16x128xf32>,
    %cst_33 = arith.constant 0.000000e+00 : f32
    %64 = vector.broadcast %cst_33 : f32 to vector<8x32xf32>
    %cst_34 = arith.constant 0.000000e+00 : f32
    %65 = vector.broadcast %cst_34 : f32 to vector<8x32xf32>
    %c0_35 = arith.constant 0 : index
    %c0_36 = arith.constant 0 : index
    %66 = vector.load %arg10[%c0_35, %c0_36] : memref<16x128xf32, #tpu.memory_space<vmem>>, vector<8x128xf32>
    %cst_37 = arith.constant dense<0.000000e+00> : vector<8x128xf32>
    %67 = tpu.matmul %64, %57, %cst_37 {dimension_numbers = #tpu.dot_dimension_numbers<[1], [0], [0], [1], [0, 0, 1, 1], [], []>} : vector<8x32xf32>, vector<32x128xf32>, vector<8x128xf32> -> vector<8x128xf32>
    %68 = arith.addf %66, %67 : vector<8x128xf32>
    %69 = math.tanh %68 : vector<8x128xf32>
    %70 = arith.negf %68 : vector<8x128xf32>
    %71 = math.exp %70 : vector<8x128xf32>
    %cst_38 = arith.constant 1.000000e+00 : f32
    %72 = vector.broadcast %cst_38 : f32 to vector<8x128xf32>
    %73 = arith.addf %72, %71 : vector<8x128xf32>
    %74 = arith.divf %72, %73 : vector<8x128xf32>
    %75 = arith.select %5, %69, %74 : vector<8x128xi1>, vector<8x128xf32>
    %76 = vector.extract_strided_slice %75 {offsets = [0, 0], sizes = [8, 32], strides = [1, 1]} : vector<8x128xf32> to vector<8x32xf32>
    %77 = vector.extract_strided_slice %75 {offsets = [0, 32], sizes = [8, 32], strides = [1, 1]} : vector<8x128xf32> to vector<8x32xf32>
    %78 = vector.extract_strided_slice %75 {offsets = [0, 64], sizes = [8, 32], strides = [1, 1]} : vector<8x128xf32> to vector<8x32xf32>
    %79 = vector.extract_strided_slice %75 {offsets = [0, 96], sizes = [8, 32], strides = [1, 1]} : vector<8x128xf32> to vector<8x32xf32>
    %80 = arith.mulf %77, %65 : vector<8x32xf32>
    %81 = arith.mulf %76, %78 : vector<8x32xf32>
    %82 = arith.addf %80, %81 : vector<8x32xf32>
    %83 = math.tanh %82 : vector<8x32xf32>
    %84 = arith.mulf %79, %83 : vector<8x32xf32>
    %c8_39 = arith.constant 8 : index
    %c0_40 = arith.constant 0 : index
    %85 = vector.load %arg10[%c8_39, %c0_40] : memref<16x128xf32, #tpu.memory_space<vmem>>, vector<8x128xf32>
    %cst_41 = arith.constant dense<0.000000e+00> : vector<8x128xf32>
    %86 = tpu.matmul %84, %57, %cst_41 {dimension_numbers = #tpu.dot_dimension_numbers<[1], [0], [0], [1], [0, 0, 1, 1], [], []>} : vector<8x32xf32>, vector<32x128xf32>, vector<8x128xf32> -> vector<8x128xf32>
    %87 = arith.addf %85, %86 : vector<8x128xf32>
    %88 = math.tanh %87 : vector<8x128xf32>
    %89 = arith.negf %87 : vector<8x128xf32>
    %90 = math.exp %89 : vector<8x128xf32>
    %cst_42 = arith.constant 1.000000e+00 : f32
    %91 = vector.broadcast %cst_42 : f32 to vector<8x128xf32>
    %92 = arith.addf %91, %90 : vector<8x128xf32>
    %93 = arith.divf %91, %92 : vector<8x128xf32>
    %94 = arith.select %5, %88, %93 : vector<8x128xi1>, vector<8x128xf32>
    %95 = vector.extract_strided_slice %94 {offsets = [0, 0], sizes = [8, 32], strides = [1, 1]} : vector<8x128xf32> to vector<8x32xf32>
    %96 = vector.extract_strided_slice %94 {offsets = [0, 32], sizes = [8, 32], strides = [1, 1]} : vector<8x128xf32> to vector<8x32xf32>
    %97 = vector.extract_strided_slice %94 {offsets = [0, 64], sizes = [8, 32], strides = [1, 1]} : vector<8x128xf32> to vector<8x32xf32>
    %98 = vector.extract_strided_slice %94 {offsets = [0, 96], sizes = [8, 32], strides = [1, 1]} : vector<8x128xf32> to vector<8x32xf32>
    %99 = arith.mulf %96, %82 : vector<8x32xf32>
    %100 = arith.mulf %95, %97 : vector<8x32xf32>
    %101 = arith.addf %99, %100 : vector<8x32xf32>
    %102 = math.tanh %101 : vector<8x32xf32>
    %103 = arith.mulf %98, %102 : vector<8x32xf32>
    %c8_43 = arith.constant 8 : index
    %c0_44 = arith.constant 0 : index
    %104 = vector.load %arg11[%c8_43, %c0_44] : memref<16x32xf32, #tpu.memory_space<vmem>>, vector<8x32xf32>
    tpu.vector_store %arg11[%c8_43, %c0_44], %103 {strides = array<i32>} : memref<16x32xf32, #tpu.memory_space<vmem>>, vector<8x32xf32>,
    %c14 = arith.constant 14 : index
    %c0_45 = arith.constant 0 : index
    %105 = vector.load %arg11[%c14, %c0_45] : memref<16x32xf32, #tpu.memory_space<vmem>>, vector<2x32xf32>
    %c0_46 = arith.constant 0 : index
    %c0_47 = arith.constant 0 : index
    %106 = vector.load %arg7[%c0_46, %c0_47] : memref<1x32xf32, #tpu.memory_space<vmem>>, vector<1x32xf32>
    %107 = vector.broadcast %106 : vector<1x32xf32> to vector<2x32xf32>
    %108 = arith.mulf %105, %107 : vector<2x32xf32>
    %cst_48 = arith.constant dense<0.000000e+00> : vector<2xf32>
    %109 = vector.multi_reduction <add>, %108, %cst_48 [1] : vector<2x32xf32> to vector<2xf32>
    %110 = vector.shape_cast %109 : vector<2xf32> to vector<2x1xf32>
    %c0_49 = arith.constant 0 : index
    %c0_50 = arith.constant 0 : index
    %111 = vector.load %arg8[%c0_49, %c0_50] : memref<1x1xf32, #tpu.memory_space<vmem>>, vector<1x1xf32>
    %112 = vector.broadcast %111 : vector<1x1xf32> to vector<2x1xf32>
    %113 = arith.addf %110, %112 : vector<2x1xf32>
    %c0_51 = arith.constant 0 : index
    %c0_52 = arith.constant 0 : index
    %114 = vector.load %arg9[%c0_51, %c0_52] : memref<2x1xf32, #tpu.memory_space<vmem>>, vector<2x1xf32>
    tpu.vector_store %arg9[%c0_51, %c0_52], %113 {strides = array<i32>} : memref<2x1xf32, #tpu.memory_space<vmem>>, vector<2x1xf32>,
    return
  }
}

</mosaic_0001>

<llo_original>
// kernel: crypto_predictor_forward.1
$region0: #{crypto_predictor_forward.1}
  #allocation0 [shape = 'u32[]', space=smem, size = 0x4, offset = 0x4, fixed_abs, tag = 'smem constant byte address 0x4 - core index']
  #allocation1 [shape = 'u32[144,128]{1,0:T(1,128)}', space=vmem, size = 0x12000, scoped, tag = 'internal scratch']
  #allocation2 [shape = 'f32[16,128]{1,0:T(8,128)}', space=vmem, size = 0x2000, scoped, tag = 'scratch operand']
  #allocation3 [shape = 'f32[16,32]{1,0:T(8,128)}', space=vmem, size = 0x2000, scoped, tag = 'scratch operand']
  #allocation4 [shape = 'f32[1,1]{1,0:T(1,128)S(1)}', space=vmem, size = 0x200, scoped, tag = 'scoped memory for crypto_predictor_forward.1']
  %s0 = inlined_call_operand.vmem [shape: f32[16,4], index: 0, kind: input, shape index: {}]
  %s1 = inlined_call_operand.vmem [shape: f32[4,128], index: 1, kind: input, shape index: {}]
  %s2 = inlined_call_operand.vmem [shape: f32[32,128], index: 2, kind: input, shape index: {}]
  %s3 = inlined_call_operand.vmem [shape: f32[1,128], index: 3, kind: input, shape index: {}]
  %s4 = inlined_call_operand.hbm [shape: f32[32,128], index: 4, kind: input, shape index: {}]
  %s5 = inlined_call_operand.hbm [shape: f32[32,128], index: 5, kind: input, shape index: {}]
  %s6 = inlined_call_operand.vmem [shape: f32[1,128], index: 6, kind: input, shape index: {}]
  %s7 = inlined_call_operand.hbm [shape: f32[1,32], index: 7, kind: input, shape index: {}]
  %s8 = inlined_call_operand.<no memory space> [shape: f32[1,1], index: 8, kind: input, shape index: {}]
  %s9 = inlined_call_operand.vmem [shape: f32[2,1], index: 9, kind: output, shape index: {}]
  %s10 = sld [smem:[#allocation0]]
  $region58: #{crypto_predictor_forward.1} parent=0
    _
  %s12 = ssub.s32 1, %s10
  %s13 = scalar_select 0, %s12, %s10
  %v14 = vstv %s8
  %15 = vst [vmem:[#allocation4] sm:$0x1] %v14
  $region1: #{crypto_predictor_forward.1} parent=0
    #allocation5 [shape = 'u8[16384]{0}', space=vmem, size = 0x4000, scoped, tag = 'input window, operand 4, single buffered']
    #allocation6 [shape = 's32[1]{0}', space=sflag, size = 0x4, scoped, tag = 'scoped memory for crypto_predictor_forward.1']
    #allocation7 [shape = 'u8[16384]{0}', space=vmem, size = 0x4000, scoped, tag = 'input window, operand 5, single buffered']
    #allocation8 [shape = 's32[1]{0}', space=sflag, size = 0x4, scoped, tag = 'scoped memory for crypto_predictor_forward.1']
    #allocation9 [shape = 'u8[512]{0}', space=vmem, size = 0x400, scoped, tag = 'input window, operand 7, single buffered']
    %16 = vsyncpa [#allocation6], 0
    %17 = vsyncpa [#allocation8], 0
    // Predicated region
    $region2: #{crypto_predictor_forward.1} parent=1 // pred_check
      _
    $region3: #{crypto_predictor_forward.1} parent=1 // pred_check_branch
      %19 = sbr.rel (0) target = $region5
    $region4: #{crypto_predictor_forward.1} parent=1 // pred_region
      _
    $region5: #{crypto_predictor_forward.1} parent=1 // pred_fallthru
      _
    // Predicated region
    $region6: #{crypto_predictor_forward.1} parent=1 // pred_check
      _
    $region7: #{crypto_predictor_forward.1} parent=1 // pred_check_branch
      %21 = sbr.rel (0) target = $region9
    $region8: #{crypto_predictor_forward.1} parent=1 // pred_region
      _
    $region9: #{crypto_predictor_forward.1} parent=1 // pred_fallthru
      _
    // Predicated region
    $region10: #{crypto_predictor_forward.1} parent=1 // pred_check
      _
    $region11: #{crypto_predictor_forward.1} parent=1 // pred_check_branch
      %23 = sbr.rel (0) target = $region13
    $region12: #{crypto_predictor_forward.1} parent=1 // pred_region
      _
    $region13: #{crypto_predictor_forward.1} parent=1 // pred_fallthru
      _
    // Predicated region
    $region14: #{crypto_predictor_forward.1} parent=1 // pred_check
      _
    $region15: #{crypto_predictor_forward.1} parent=1 // pred_check_branch
      %25 = sbr.rel (0) target = $region17
    $region16: #{crypto_predictor_forward.1} parent=1 // pred_region
      _
    $region17: #{crypto_predictor_forward.1} parent=1 // pred_fallthru
      _
    // Predicated region
    $region18: #{crypto_predictor_forward.1} parent=1 // pred_check
      _
    $region19: #{crypto_predictor_forward.1} parent=1 // pred_check_branch
      %27 = sbr.rel (0) target = $region21
    $region20: #{crypto_predictor_forward.1} parent=1 // pred_region
      %s29 = ssub.s32 512, 512
      %30 = vsyncadd [#allocation6], %s29
      %s31 = sshll.u32 [#allocation5], 4
      %s32 = int_to_ptr.vmem [resolvable:$true] %s31
      %37 = dma.hbm_to_vmem [thread:$0]  %s4, 512, %s32, [#allocation6], 128, 128, 8
    $region21: #{crypto_predictor_forward.1} parent=1 // pred_fallthru
      _
    // Predicated region
    $region22: #{crypto_predictor_forward.1} parent=1 // pred_check
      _
    $region23: #{crypto_predictor_forward.1} parent=1 // pred_check_branch
      %39 = sbr.rel (0) target = $region25
    $region24: #{crypto_predictor_forward.1} parent=1 // pred_region
      %s41 = ssub.s32 512, 512
      %42 = vsyncadd [#allocation8], %s41
      %s43 = sshll.u32 [#allocation7], 4
      %s44 = int_to_ptr.vmem [resolvable:$true] %s43
      %49 = dma.hbm_to_vmem [thread:$0]  %s5, 512, %s44, [#allocation8], 128, 128, 8
    $region25: #{crypto_predictor_forward.1} parent=1 // pred_fallthru
      _
    // Predicated region
    $region26: #{crypto_predictor_forward.1} parent=1 // pred_check
      _
    $region27: #{crypto_predictor_forward.1} parent=1 // pred_check_branch
      %51 = sbr.rel (0) target = $region29
    $region28: #{crypto_predictor_forward.1} parent=1 // pred_region
      _
    $region29: #{crypto_predictor_forward.1} parent=1 // pred_fallthru
      _
    // Predicated region
    $region30: #{crypto_predictor_forward.1} parent=1 // pred_check
      _
    $region31: #{crypto_predictor_forward.1} parent=1 // pred_check_branch
      %53 = sbr.rel (0) target = $region33
    $region32: #{crypto_predictor_forward.1} parent=1 // pred_region
      %s55 = ssub.s32 16, 16
      %56 = vsyncadd [#allocation8], %s55
      %s58 = sshll.u32 [#allocation9], 4
      %s59 = int_to_ptr.vmem [resolvable:$true] %s58
      %61 = dma.hbm_to_vmem [thread:$0]  %s7, 16, %s59, [#allocation8]
    $region33: #{crypto_predictor_forward.1} parent=1 // pred_fallthru
      _
    // Predicated region
    $region34: #{crypto_predictor_forward.1} parent=1 // pred_check
      _
    $region35: #{crypto_predictor_forward.1} parent=1 // pred_check_branch
      %63 = sbr.rel (0) target = $region37
    $region36: #{crypto_predictor_forward.1} parent=1 // pred_region
      _
    $region37: #{crypto_predictor_forward.1} parent=1 // pred_fallthru
      _
    // Predicated region
    $region38: #{crypto_predictor_forward.1} parent=1 // pred_check
      _
    $region39: #{crypto_predictor_forward.1} parent=1 // pred_check_branch
      %65 = sbr.rel (0) target = $region41
    $region40: #{crypto_predictor_forward.1} parent=1 // pred_region
      %66 = dma.done [#allocation6], 512
    $region41: #{crypto_predictor_forward.1} parent=1 // pred_fallthru
      _
    // Predicated region
    $region42: #{crypto_predictor_forward.1} parent=1 // pred_check
      _
    $region43: #{crypto_predictor_forward.1} parent=1 // pred_check_branch
      %68 = sbr.rel (0) target = $region45
    $region44: #{crypto_predictor_forward.1} parent=1 // pred_region
      %69 = dma.done [#allocation8], 512
    $region45: #{crypto_predictor_forward.1} parent=1 // pred_fallthru
      _
    // Predicated region
    $region46: #{crypto_predictor_forward.1} parent=1 // pred_check
      _
    $region47: #{crypto_predictor_forward.1} parent=1 // pred_check_branch
      %71 = sbr.rel (0) target = $region49
    $region48: #{crypto_predictor_forward.1} parent=1 // pred_region
      %72 = dma.done [#allocation8], 16
    $region49: #{crypto_predictor_forward.1} parent=1 // pred_fallthru
      _
    %v73 = vlaneseq
    %v74 = vand.u32 %v73, 127
    %vm75 = vcmp.ge.s32.totalorder %v74, 64
    %vm76 = vcmp.lt.s32.totalorder %v74, 96
    %vm77 = vmand %vm75, %vm76
    %v78 = vld [vmem:[%s1] sm:$0xf]
    %v79 = vld [vmem:[%s2] sm:$0xff]
    %v80 = vld [vmem:[%s2 + $0x8] sm:$0xff]
    %v81 = vld [vmem:[%s2 + $0x10] sm:$0xff]
    %v82 = vld [vmem:[%s2 + $0x18] sm:$0xff]
    %v83 = vld [vmem:[%s3] sm:$0x1]
    %v84 = vld [vmem:[%s0] sm:$0xff]
    %v85 = vld [vmem:[%s0 + $0x8] sm:$0xff]
    %v87 = vlaneseq
    %v88 = vshrl.u32 %v87, 7
    %v89 = vsub.s32 0, %v88
    %v90 = vrot.slane %v83, %v89
    %vm92 = vcmask 31744
    %v94 = vsel %vm92, %v84, 0
    %v97 = vsel %vm92, %v85, 0
    %vm99 = vcmask 1043456
    %v101 = vsel %vm99, %v78, 0
    %103 = vmatprep.subr.mxu0 0.0
    %104 = vmatpush1.msra.mxu0 %v101
    %105 = vmatprep.subr.mxu0 0.0
    %106 = vmatpush1.msra.mxu0 0.0
    %107 = vmatprep.subr.mxu0 0.0
    %108 = vmatpush1.msra.mxu0 0.0
    %109 = vmatprep.subr.mxu0 0.0
    %110 = vmatpush1.msra.mxu0 0.0
    %111 = vmatprep.subr.mxu0 0.0
    %112 = vmatpush1.msra.mxu0 0.0
    %113 = vmatprep.subr.mxu0 0.0
    %114 = vmatpush1.msra.mxu0 0.0
    %115 = vmatprep.subr.mxu0 0.0
    %116 = vmatpush1.msra.mxu0 0.0
    %117 = vmatprep.subr.mxu0 0.0
    %118 = vmatpush1.msra.mxu0 0.0
    %119 = vmatprep.subr.mxu0 0.0
    %120 = vmatpush1.msra.mxu0 0.0
    %121 = vmatprep.subr.mxu0 0.0
    %122 = vmatpush1.msra.mxu0 0.0
    %123 = vmatprep.subr.mxu0 0.0
    %124 = vmatpush1.msra.mxu0 0.0
    %125 = vmatprep.subr.mxu0 0.0
    %126 = vmatpush1.msra.mxu0 0.0
    %127 = vmatprep.subr.mxu0 0.0
    %128 = vmatpush1.msra.mxu0 0.0
    %129 = vmatprep.subr.mxu0 0.0
    %130 = vmatpush1.msra.mxu0 0.0
    %131 = vmatprep.subr.mxu0 0.0
    %132 = vmatpush1.msra.mxu0 0.0
    %133 = vmatprep.subr.mxu0 0.0
    %134 = vmatpush1.msra.mxu0 0.0
    %135 = vmatprep.subr.mxu0 0.0
    %136 = vmatpush1.msra.mxu0 0.0
    %137 = vmatprep.subr.mxu0 0.0
    %138 = vmatpush1.msra.mxu0 0.0
    %139 = vmatprep.subr.mxu0 0.0
    %140 = vmatpush1.msra.mxu0 0.0
    %141 = vmatprep.subr.mxu0 0.0
    %142 = vmatpush1.msra.mxu0 0.0
    %143 = vmatprep.subr.mxu0 0.0
    %144 = vmatpush1.msra.mxu0 0.0
    %145 = vmatprep.subr.mxu0 0.0
    %146 = vmatpush1.msra.mxu0 0.0
    %147 = vmatprep.subr.mxu0 0.0
    %148 = vmatpush1.msra.mxu0 0.0
    %149 = vmatprep.subr.mxu0 0.0
    %150 = vmatpush1.msra.mxu0 0.0
    %151 = vmatprep.subr.mxu0 0.0
    %152 = vmatpush1.msra.mxu0 0.0
    %153 = vmatprep.subr.mxu0 0.0
    %154 = vmatpush1.msra.mxu0 0.0
    %155 = vmatprep.subr.mxu0 0.0
    %156 = vmatpush1.msra.mxu0 0.0
    %157 = vmatprep.subr.mxu0 0.0
    %158 = vmatpush1.msra.mxu0 0.0
    %159 = vmatprep.subr.mxu0 0.0
    %160 = vmatpush1.msra.mxu0 0.0
    %161 = vmatprep.subr.mxu0 0.0
    %162 = vmatpush1.msra.mxu0 0.0
    %163 = vmatprep.subr.mxu0 0.0
    %164 = vmatpush1.msra.mxu0 0.0
    %165 = vmatprep.subr.mxu0 0.0
    %166 = vmatpush1.msra.mxu0 0.0
    %167 = vmatprep.mubr.f32.mxu0 0.0
    %168 = vmatmul.mubr.f32.gmra.mrb[0].mxu0 %v94
    %v169 = vpop.f32.mrb[0].mxu0
    %v170 = vadd.f32 %v90, %v169
    %v171 = vpop.f32.mrb[0].mxu0
    %172 = vmatprep.mubr.f32.mxu0 0.0
    %173 = vmatmul.mubr.f32.gmra.mrb[0].mxu0 %v97
    %v174 = vpop.f32.mrb[0].mxu0
    %v175 = vadd.f32 %v90, %v174
    %v176 = vpop.f32.mrb[0].mxu0
    %177 = vdwg.mxu0
    %178 = vst [vmem:[#allocation2] sm:$0xff] %v170
    %179 = vst [vmem:[#allocation2 + $0x8] sm:$0xff] %v175
    %v180 = vld [vmem:[#allocation2] sm:$0xff]
    %vm181 = vcmask 261120
    %v183 = vsel %vm181, 0.0, 0
    %185 = vmatprep.subr.mxu0 0.0
    %186 = vmatpush1.msra.mxu0 %v79
    %187 = vmatprep.subr.mxu0 0.0
    %188 = vmatpush1.msra.mxu0 %v80
    %189 = vmatprep.subr.mxu0 0.0
    %190 = vmatpush1.msra.mxu0 %v81
    %191 = vmatprep.subr.mxu0 0.0
    %192 = vmatpush1.msra.mxu0 %v82
    %193 = vmatprep.subr.mxu0 0.0
    %194 = vmatpush1.msra.mxu0 0.0
    %195 = vmatprep.subr.mxu0 0.0
    %196 = vmatpush1.msra.mxu0 0.0
    %197 = vmatprep.subr.mxu0 0.0
    %198 = vmatpush1.msra.mxu0 0.0
    %199 = vmatprep.subr.mxu0 0.0
    %200 = vmatpush1.msra.mxu0 0.0
    %201 = vmatprep.subr.mxu0 0.0
    %202 = vmatpush1.msra.mxu0 0.0
    %203 = vmatprep.subr.mxu0 0.0
    %204 = vmatpush1.msra.mxu0 0.0
    %205 = vmatprep.subr.mxu0 0.0
    %206 = vmatpush1.msra.mxu0 0.0
    %207 = vmatprep.subr.mxu0 0.0
    %208 = vmatpush1.msra.mxu0 0.0
    %209 = vmatprep.subr.mxu0 0.0
    %210 = vmatpush1.msra.mxu0 0.0
    %211 = vmatprep.subr.mxu0 0.0
    %212 = vmatpush1.msra.mxu0 0.0
    %213 = vmatprep.subr.mxu0 0.0
    %214 = vmatpush1.msra.mxu0 0.0
    %215 = vmatprep.subr.mxu0 0.0
    %216 = vmatpush1.msra.mxu0 0.0
    %217 = vmatprep.subr.mxu0 0.0
    %218 = vmatpush1.msra.mxu0 0.0
    %219 = vmatprep.subr.mxu0 0.0
    %220 = vmatpush1.msra.mxu0 0.0
    %221 = vmatprep.subr.mxu0 0.0
    %222 = vmatpush1.msra.mxu0 0.0
    %223 = vmatprep.subr.mxu0 0.0
    %224 = vmatpush1.msra.mxu0 0.0
    %225 = vmatprep.subr.mxu0 0.0
    %226 = vmatpush1.msra.mxu0 0.0
    %227 = vmatprep.subr.mxu0 0.0
    %228 = vmatpush1.msra.mxu0 0.0
    %229 = vmatprep.subr.mxu0 0.0
    %230 = vmatpush1.msra.mxu0 0.0
    %231 = vmatprep.subr.mxu0 0.0
    %232 = vmatpush1.msra.mxu0 0.0
    %233 = vmatprep.subr.mxu0 0.0
    %234 = vmatpush1.msra.mxu0 0.0
    %235 = vmatprep.subr.mxu0 0.0
    %236 = vmatpush1.msra.mxu0 0.0
    %237 = vmatprep.subr.mxu0 0.0
    %238 = vmatpush1.msra.mxu0 0.0
    %239 = vmatprep.subr.mxu0 0.0
    %240 = vmatpush1.msra.mxu0 0.0
    %241 = vmatprep.subr.mxu0 0.0
    %242 = vmatpush1.msra.mxu0 0.0
    %243 = vmatprep.subr.mxu0 0.0
    %244 = vmatpush1.msra.mxu0 0.0
    %245 = vmatprep.subr.mxu0 0.0
    %246 = vmatpush1.msra.mxu0 0.0
    %247 = vmatprep.subr.mxu0 0.0
    %248 = vmatpush1.msra.mxu0 0.0
    %249 = vmatprep.mubr.f32.mxu0 0.0
    %250 = vmatmul.mubr.f32.gmra.mrb[0].mxu0 %v183
    %v251 = vpop.f32.mrb[0].mxu0
    %v252 = vadd.f32 0.0, %v251
    %v253 = vpop.f32.mrb[0].mxu0
    %254 = vdwg.mxu0
    %v255 = vadd.f32 %v180, %v252
    %v256 = vtanh.pop %v255
    %v257 = vxor.u32 %v255, 2147483648
    %v258 = vmul.f32 %v257, 1.442695
    %v259 = vpow.pop %v258
    %v260 = vadd.f32 %v259, 1.0
    %v261 = vrcp.pop %v260
    %v262 = vmul.f32 1.0, %v261
    %v263 = vsel %vm77, %v256, %v262
    %v264 = vmul.f32 %v263, 0.0
    %266 = vrot.lane.b32.xlu0 %v263, 64
    %v267 = vpop.permute.xlu0 %266
    %v269 = vmul.f32 %v263, %v267
    %271 = vrot.lane.b32.xlu0 %v269, 32
    %v272 = vpop.permute.xlu0 %271
    %v274 = vadd.f32 %v264, %v272
    %v275 = vtanh.pop %v274
    %277 = vrot.lane.b32.xlu0 %v275, 64
    %v278 = vpop.permute.xlu0 %277
    %v280 = vmul.f32 %v263, %v278
    %282 = vrot.lane.b32.xlu0 %v280, 32
    %v283 = vpop.permute.xlu0 %282
    %285 = vst.msk [vmem:[#allocation3] sm:$0xff] %vm181, %v283
    %v286 = vld [vmem:[#allocation2 + $0x8] sm:$0xff]
    %v287 = vsel %vm181, %v283, 0
    %289 = vmatprep.subr.mxu0 0.0
    %290 = vmatpush1.msra.mxu0 %v79
    %291 = vmatprep.subr.mxu0 0.0
    %292 = vmatpush1.msra.mxu0 %v80
    %293 = vmatprep.subr.mxu0 0.0
    %294 = vmatpush1.msra.mxu0 %v81
    %295 = vmatprep.subr.mxu0 0.0
    %296 = vmatpush1.msra.mxu0 %v82
    %297 = vmatprep.subr.mxu0 0.0
    %298 = vmatpush1.msra.mxu0 0.0
    %299 = vmatprep.subr.mxu0 0.0
    %300 = vmatpush1.msra.mxu0 0.0
    %301 = vmatprep.subr.mxu0 0.0
    %302 = vmatpush1.msra.mxu0 0.0
    %303 = vmatprep.subr.mxu0 0.0
    %304 = vmatpush1.msra.mxu0 0.0
    %305 = vmatprep.subr.mxu0 0.0
    %306 = vmatpush1.msra.mxu0 0.0
    %307 = vmatprep.subr.mxu0 0.0
    %308 = vmatpush1.msra.mxu0 0.0
    %309 = vmatprep.subr.mxu0 0.0
    %310 = vmatpush1.msra.mxu0 0.0
    %311 = vmatprep.subr.mxu0 0.0
    %312 = vmatpush1.msra.mxu0 0.0
    %313 = vmatprep.subr.mxu0 0.0
    %314 = vmatpush1.msra.mxu0 0.0
    %315 = vmatprep.subr.mxu0 0.0
    %316 = vmatpush1.msra.mxu0 0.0
    %317 = vmatprep.subr.mxu0 0.0
    %318 = vmatpush1.msra.mxu0 0.0
    %319 = vmatprep.subr.mxu0 0.0
    %320 = vmatpush1.msra.mxu0 0.0
    %321 = vmatprep.subr.mxu0 0.0
    %322 = vmatpush1.msra.mxu0 0.0
    %323 = vmatprep.subr.mxu0 0.0
    %324 = vmatpush1.msra.mxu0 0.0
    %325 = vmatprep.subr.mxu0 0.0
    %326 = vmatpush1.msra.mxu0 0.0
    %327 = vmatprep.subr.mxu0 0.0
    %328 = vmatpush1.msra.mxu0 0.0
    %329 = vmatprep.subr.mxu0 0.0
    %330 = vmatpush1.msra.mxu0 0.0
    %331 = vmatprep.subr.mxu0 0.0
    %332 = vmatpush1.msra.mxu0 0.0
    %333 = vmatprep.subr.mxu0 0.0
    %334 = vmatpush1.msra.mxu0 0.0
    %335 = vmatprep.subr.mxu0 0.0
    %336 = vmatpush1.msra.mxu0 0.0
    %337 = vmatprep.subr.mxu0 0.0
    %338 = vmatpush1.msra.mxu0 0.0
    %339 = vmatprep.subr.mxu0 0.0
    %340 = vmatpush1.msra.mxu0 0.0
    %341 = vmatprep.subr.mxu0 0.0
    %342 = vmatpush1.msra.mxu0 0.0
    %343 = vmatprep.subr.mxu0 0.0
    %344 = vmatpush1.msra.mxu0 0.0
    %345 = vmatprep.subr.mxu0 0.0
    %346 = vmatpush1.msra.mxu0 0.0
    %347 = vmatprep.subr.mxu0 0.0
    %348 = vmatpush1.msra.mxu0 0.0
    %349 = vmatprep.subr.mxu0 0.0
    %350 = vmatpush1.msra.mxu0 0.0
    %351 = vmatprep.subr.mxu0 0.0
    %352 = vmatpush1.msra.mxu0 0.0
    %353 = vmatprep.mubr.f32.mxu0 0.0
    %354 = vmatmul.mubr.f32.gmra.mrb[0].mxu0 %v287
    %v355 = vpop.f32.mrb[0].mxu0
    %v356 = vadd.f32 0.0, %v355
    %v357 = vpop.f32.mrb[0].mxu0
    %358 = vdwg.mxu0
    %v359 = vadd.f32 %v286, %v356
    %v360 = vtanh.pop %v359
    %v361 = vxor.u32 %v359, 2147483648
    %v362 = vmul.f32 %v361, 1.442695
    %v363 = vpow.pop %v362
    %v364 = vadd.f32 %v363, 1.0
    %v365 = vrcp.pop %v364
    %v366 = vmul.f32 1.0, %v365
    %v367 = vsel %vm77, %v360, %v366
    %v368 = vmul.f32 %v367, %v274
    %370 = vrot.lane.b32.xlu0 %v367, 64
    %v371 = vpop.permute.xlu0 %370
    %v373 = vmul.f32 %v367, %v371
    %375 = vrot.lane.b32.xlu0 %v373, 32
    %v376 = vpop.permute.xlu0 %375
    %v378 = vadd.f32 %v368, %v376
    %v379 = vtanh.pop %v378
    %381 = vrot.lane.b32.xlu0 %v379, 64
    %v382 = vpop.permute.xlu0 %381
    %v384 = vmul.f32 %v367, %v382
    %386 = vrot.lane.b32.xlu0 %v384, 32
    %v387 = vpop.permute.xlu0 %386
    %389 = vst.msk [vmem:[#allocation3 + $0x8] sm:$0xff] %vm181, %v387
    %v390 = vld [vmem:[#allocation5] sm:$0xff]
    %v391 = vld [vmem:[#allocation5 + $0x8] sm:$0xff]
    %v392 = vld [vmem:[#allocation5 + $0x10] sm:$0xff]
    %v393 = vld [vmem:[#allocation5 + $0x18] sm:$0xff]
    %v394 = vld [vmem:[#allocation7] sm:$0xff]
    %v395 = vld [vmem:[#allocation7 + $0x8] sm:$0xff]
    %v396 = vld [vmem:[#allocation7 + $0x10] sm:$0xff]
    %v397 = vld [vmem:[#allocation7 + $0x18] sm:$0xff]
    %v398 = vld [vmem:[%s6] sm:$0x1]
    %v399 = vld [vmem:[#allocation3] sm:$0xff]
    %v400 = vld [vmem:[#allocation3 + $0x8] sm:$0xff]
    %v402 = vlaneseq
    %v403 = vshrl.u32 %v402, 7
    %v404 = vsub.s32 0, %v403
    %v405 = vrot.slane %v398, %v404
    %v408 = vsel %vm181, %v399, 0
    %v411 = vsel %vm181, %v400, 0
    %413 = vmatprep.subr.mxu0 0.0
    %414 = vmatpush1.msra.mxu0 %v390
    %415 = vmatprep.subr.mxu0 0.0
    %416 = vmatpush1.msra.mxu0 %v391
    %417 = vmatprep.subr.mxu0 0.0
    %418 = vmatpush1.msra.mxu0 %v392
    %419 = vmatprep.subr.mxu0 0.0
    %420 = vmatpush1.msra.mxu0 %v393
    %421 = vmatprep.subr.mxu0 0.0
    %422 = vmatpush1.msra.mxu0 0.0
    %423 = vmatprep.subr.mxu0 0.0
    %424 = vmatpush1.msra.mxu0 0.0
    %425 = vmatprep.subr.mxu0 0.0
    %426 = vmatpush1.msra.mxu0 0.0
    %427 = vmatprep.subr.mxu0 0.0
    %428 = vmatpush1.msra.mxu0 0.0
    %429 = vmatprep.subr.mxu0 0.0
    %430 = vmatpush1.msra.mxu0 0.0
    %431 = vmatprep.subr.mxu0 0.0
    %432 = vmatpush1.msra.mxu0 0.0
    %433 = vmatprep.subr.mxu0 0.0
    %434 = vmatpush1.msra.mxu0 0.0
    %435 = vmatprep.subr.mxu0 0.0
    %436 = vmatpush1.msra.mxu0 0.0
    %437 = vmatprep.subr.mxu0 0.0
    %438 = vmatpush1.msra.mxu0 0.0
    %439 = vmatprep.subr.mxu0 0.0
    %440 = vmatpush1.msra.mxu0 0.0
    %441 = vmatprep.subr.mxu0 0.0
    %442 = vmatpush1.msra.mxu0 0.0
    %443 = vmatprep.subr.mxu0 0.0
    %444 = vmatpush1.msra.mxu0 0.0
    %445 = vmatprep.subr.mxu0 0.0
    %446 = vmatpush1.msra.mxu0 0.0
    %447 = vmatprep.subr.mxu0 0.0
    %448 = vmatpush1.msra.mxu0 0.0
    %449 = vmatprep.subr.mxu0 0.0
    %450 = vmatpush1.msra.mxu0 0.0
    %451 = vmatprep.subr.mxu0 0.0
    %452 = vmatpush1.msra.mxu0 0.0
    %453 = vmatprep.subr.mxu0 0.0
    %454 = vmatpush1.msra.mxu0 0.0
    %455 = vmatprep.subr.mxu0 0.0
    %456 = vmatpush1.msra.mxu0 0.0
    %457 = vmatprep.subr.mxu0 0.0
    %458 = vmatpush1.msra.mxu0 0.0
    %459 = vmatprep.subr.mxu0 0.0
    %460 = vmatpush1.msra.mxu0 0.0
    %461 = vmatprep.subr.mxu0 0.0
    %462 = vmatpush1.msra.mxu0 0.0
    %463 = vmatprep.subr.mxu0 0.0
    %464 = vmatpush1.msra.mxu0 0.0
    %465 = vmatprep.subr.mxu0 0.0
    %466 = vmatpush1.msra.mxu0 0.0
    %467 = vmatprep.subr.mxu0 0.0
    %468 = vmatpush1.msra.mxu0 0.0
    %469 = vmatprep.subr.mxu0 0.0
    %470 = vmatpush1.msra.mxu0 0.0
    %471 = vmatprep.subr.mxu0 0.0
    %472 = vmatpush1.msra.mxu0 0.0
    %473 = vmatprep.subr.mxu0 0.0
    %474 = vmatpush1.msra.mxu0 0.0
    %475 = vmatprep.subr.mxu0 0.0
    %476 = vmatpush1.msra.mxu0 0.0
    %477 = vmatprep.mubr.f32.mxu0 0.0
    %478 = vmatmul.mubr.f32.gmra.mrb[0].mxu0 %v408
    %v479 = vpop.f32.mrb[0].mxu0
    %v480 = vadd.f32 %v405, %v479
    %v481 = vpop.f32.mrb[0].mxu0
    %482 = vmatprep.mubr.f32.mxu0 0.0
    %483 = vmatmul.mubr.f32.gmra.mrb[0].mxu0 %v411
    %v484 = vpop.f32.mrb[0].mxu0
    %v485 = vadd.f32 %v405, %v484
    %v486 = vpop.f32.mrb[0].mxu0
    %487 = vdwg.mxu0
    %488 = vst [vmem:[#allocation2] sm:$0xff] %v480
    %489 = vst [vmem:[#allocation2 + $0x8] sm:$0xff] %v485
    %v490 = vld [vmem:[#allocation2] sm:$0xff]
    %491 = vmatprep.subr.mxu0 0.0
    %492 = vmatpush1.msra.mxu0 %v394
    %493 = vmatprep.subr.mxu0 0.0
    %494 = vmatpush1.msra.mxu0 %v395
    %495 = vmatprep.subr.mxu0 0.0
    %496 = vmatpush1.msra.mxu0 %v396
    %497 = vmatprep.subr.mxu0 0.0
    %498 = vmatpush1.msra.mxu0 %v397
    %499 = vmatprep.subr.mxu0 0.0
    %500 = vmatpush1.msra.mxu0 0.0
    %501 = vmatprep.subr.mxu0 0.0
    %502 = vmatpush1.msra.mxu0 0.0
    %503 = vmatprep.subr.mxu0 0.0
    %504 = vmatpush1.msra.mxu0 0.0
    %505 = vmatprep.subr.mxu0 0.0
    %506 = vmatpush1.msra.mxu0 0.0
    %507 = vmatprep.subr.mxu0 0.0
    %508 = vmatpush1.msra.mxu0 0.0
    %509 = vmatprep.subr.mxu0 0.0
    %510 = vmatpush1.msra.mxu0 0.0
    %511 = vmatprep.subr.mxu0 0.0
    %512 = vmatpush1.msra.mxu0 0.0
    %513 = vmatprep.subr.mxu0 0.0
    %514 = vmatpush1.msra.mxu0 0.0
    %515 = vmatprep.subr.mxu0 0.0
    %516 = vmatpush1.msra.mxu0 0.0
    %517 = vmatprep.subr.mxu0 0.0
    %518 = vmatpush1.msra.mxu0 0.0
    %519 = vmatprep.subr.mxu0 0.0
    %520 = vmatpush1.msra.mxu0 0.0
    %521 = vmatprep.subr.mxu0 0.0
    %522 = vmatpush1.msra.mxu0 0.0
    %523 = vmatprep.subr.mxu0 0.0
    %524 = vmatpush1.msra.mxu0 0.0
    %525 = vmatprep.subr.mxu0 0.0
    %526 = vmatpush1.msra.mxu0 0.0
    %527 = vmatprep.subr.mxu0 0.0
    %528 = vmatpush1.msra.mxu0 0.0
    %529 = vmatprep.subr.mxu0 0.0
    %530 = vmatpush1.msra.mxu0 0.0
    %531 = vmatprep.subr.mxu0 0.0
    %532 = vmatpush1.msra.mxu0 0.0
    %533 = vmatprep.subr.mxu0 0.0
    %534 = vmatpush1.msra.mxu0 0.0
    %535 = vmatprep.subr.mxu0 0.0
    %536 = vmatpush1.msra.mxu0 0.0
    %537 = vmatprep.subr.mxu0 0.0
    %538 = vmatpush1.msra.mxu0 0.0
    %539 = vmatprep.subr.mxu0 0.0
    %540 = vmatpush1.msra.mxu0 0.0
    %541 = vmatprep.subr.mxu0 0.0
    %542 = vmatpush1.msra.mxu0 0.0
    %543 = vmatprep.subr.mxu0 0.0
    %544 = vmatpush1.msra.mxu0 0.0
    %545 = vmatprep.subr.mxu0 0.0
    %546 = vmatpush1.msra.mxu0 0.0
    %547 = vmatprep.subr.mxu0 0.0
    %548 = vmatpush1.msra.mxu0 0.0
    %549 = vmatprep.subr.mxu0 0.0
    %550 = vmatpush1.msra.mxu0 0.0
    %551 = vmatprep.subr.mxu0 0.0
    %552 = vmatpush1.msra.mxu0 0.0
    %553 = vmatprep.subr.mxu0 0.0
    %554 = vmatpush1.msra.mxu0 0.0
    %555 = vmatprep.mubr.f32.mxu0 0.0
    %556 = vmatmul.mubr.f32.gmra.mrb[0].mxu0 %v183
    %v557 = vpop.f32.mrb[0].mxu0
    %v558 = vadd.f32 0.0, %v557
    %v559 = vpop.f32.mrb[0].mxu0
    %560 = vdwg.mxu0
    %v561 = vadd.f32 %v490, %v558
    %v562 = vtanh.pop %v561
    %v563 = vxor.u32 %v561, 2147483648
    %v564 = vmul.f32 %v563, 1.442695
    %v565 = vpow.pop %v564
    %v566 = vadd.f32 %v565, 1.0
    %v567 = vrcp.pop %v566
    %v568 = vmul.f32 1.0, %v567
    %v569 = vsel %vm77, %v562, %v568
    %v570 = vmul.f32 %v569, 0.0
    %572 = vrot.lane.b32.xlu0 %v569, 64
    %v573 = vpop.permute.xlu0 %572
    %v575 = vmul.f32 %v569, %v573
    %577 = vrot.lane.b32.xlu0 %v575, 32
    %v578 = vpop.permute.xlu0 %577
    %v580 = vadd.f32 %v570, %v578
    %v581 = vtanh.pop %v580
    %583 = vrot.lane.b32.xlu0 %v581, 64
    %v584 = vpop.permute.xlu0 %583
    %v586 = vmul.f32 %v569, %v584
    %v587 = vld [vmem:[#allocation2 + $0x8] sm:$0xff]
    %589 = vrot.lane.b32.xlu0 %v586, 32
    %v590 = vpop.permute.xlu0 %589
    %v591 = vsel %vm181, %v590, 0
    %593 = vmatprep.subr.mxu0 0.0
    %594 = vmatpush1.msra.mxu0 %v394
    %595 = vmatprep.subr.mxu0 0.0
    %596 = vmatpush1.msra.mxu0 %v395
    %597 = vmatprep.subr.mxu0 0.0
    %598 = vmatpush1.msra.mxu0 %v396
    %599 = vmatprep.subr.mxu0 0.0
    %600 = vmatpush1.msra.mxu0 %v397
    %601 = vmatprep.subr.mxu0 0.0
    %602 = vmatpush1.msra.mxu0 0.0
    %603 = vmatprep.subr.mxu0 0.0
    %604 = vmatpush1.msra.mxu0 0.0
    %605 = vmatprep.subr.mxu0 0.0
    %606 = vmatpush1.msra.mxu0 0.0
    %607 = vmatprep.subr.mxu0 0.0
    %608 = vmatpush1.msra.mxu0 0.0
    %609 = vmatprep.subr.mxu0 0.0
    %610 = vmatpush1.msra.mxu0 0.0
    %611 = vmatprep.subr.mxu0 0.0
    %612 = vmatpush1.msra.mxu0 0.0
    %613 = vmatprep.subr.mxu0 0.0
    %614 = vmatpush1.msra.mxu0 0.0
    %615 = vmatprep.subr.mxu0 0.0
    %616 = vmatpush1.msra.mxu0 0.0
    %617 = vmatprep.subr.mxu0 0.0
    %618 = vmatpush1.msra.mxu0 0.0
    %619 = vmatprep.subr.mxu0 0.0
    %620 = vmatpush1.msra.mxu0 0.0
    %621 = vmatprep.subr.mxu0 0.0
    %622 = vmatpush1.msra.mxu0 0.0
    %623 = vmatprep.subr.mxu0 0.0
    %624 = vmatpush1.msra.mxu0 0.0
    %625 = vmatprep.subr.mxu0 0.0
    %626 = vmatpush1.msra.mxu0 0.0
    %627 = vmatprep.subr.mxu0 0.0
    %628 = vmatpush1.msra.mxu0 0.0
    %629 = vmatprep.subr.mxu0 0.0
    %630 = vmatpush1.msra.mxu0 0.0
    %631 = vmatprep.subr.mxu0 0.0
    %632 = vmatpush1.msra.mxu0 0.0
    %633 = vmatprep.subr.mxu0 0.0
    %634 = vmatpush1.msra.mxu0 0.0
    %635 = vmatprep.subr.mxu0 0.0
    %636 = vmatpush1.msra.mxu0 0.0
    %637 = vmatprep.subr.mxu0 0.0
    %638 = vmatpush1.msra.mxu0 0.0
    %639 = vmatprep.subr.mxu0 0.0
    %640 = vmatpush1.msra.mxu0 0.0
    %641 = vmatprep.subr.mxu0 0.0
    %642 = vmatpush1.msra.mxu0 0.0
    %643 = vmatprep.subr.mxu0 0.0
    %644 = vmatpush1.msra.mxu0 0.0
    %645 = vmatprep.subr.mxu0 0.0
    %646 = vmatpush1.msra.mxu0 0.0
    %647 = vmatprep.subr.mxu0 0.0
    %648 = vmatpush1.msra.mxu0 0.0
    %649 = vmatprep.subr.mxu0 0.0
    %650 = vmatpush1.msra.mxu0 0.0
    %651 = vmatprep.subr.mxu0 0.0
    %652 = vmatpush1.msra.mxu0 0.0
    %653 = vmatprep.subr.mxu0 0.0
    %654 = vmatpush1.msra.mxu0 0.0
    %655 = vmatprep.subr.mxu0 0.0
    %656 = vmatpush1.msra.mxu0 0.0
    %657 = vmatprep.mubr.f32.mxu0 0.0
    %658 = vmatmul.mubr.f32.gmra.mrb[0].mxu0 %v591
    %v659 = vpop.f32.mrb[0].mxu0
    %v660 = vadd.f32 0.0, %v659
    %v661 = vpop.f32.mrb[0].mxu0
    %662 = vdwg.mxu0
    %v663 = vadd.f32 %v587, %v660
    %v664 = vtanh.pop %v663
    %v665 = vxor.u32 %v663, 2147483648
    %v666 = vmul.f32 %v665, 1.442695
    %v667 = vpow.pop %v666
    %v668 = vadd.f32 %v667, 1.0
    %v669 = vrcp.pop %v668
    %v670 = vmul.f32 1.0, %v669
    %v671 = vsel %vm77, %v664, %v670
    %v672 = vmul.f32 %v671, %v580
    %674 = vrot.lane.b32.xlu0 %v671, 64
    %v675 = vpop.permute.xlu0 %674
    %v677 = vmul.f32 %v671, %v675
    %679 = vrot.lane.b32.xlu0 %v677, 32
    %v680 = vpop.permute.xlu0 %679
    %v682 = vadd.f32 %v672, %v680
    %v683 = vtanh.pop %v682
    %685 = vrot.lane.b32.xlu0 %v683, 64
    %v686 = vpop.permute.xlu0 %685
    %v688 = vmul.f32 %v671, %v686
    %690 = vrot.lane.b32.xlu0 %v688, 32
    %v691 = vpop.permute.xlu0 %690
    %693 = vst.msk [vmem:[#allocation3 + $0x8] sm:$0xff] %vm181, %v691
    %v694 = vld [vmem:[#allocation3 + $0xe] sm:$0x3]
    %v695 = vld [vmem:[#allocation9] sm:$0x1]
    %v697 = vlaneseq
    %v698 = vshrl.u32 %v697, 7
    %v699 = vsub.s32 0, %v698
    %v700 = vrot.slane %v695, %v699
    %v702 = vmul.f32 %v694, %v700
    %vm703 = vcmask 254976
    %v704 = vsel %vm703, %v702, 0.0
    %705 = vadd.xlane.f32.xlu0 %v704
    %v706 = vpop.xlane.xlu0 %705
    %v707 = vld [vmem:[#allocation4] sm:$0x1]
    %v709 = vlaneseq
    %v710 = vshrl.u32 %v709, 7
    %v711 = vsub.s32 0, %v710
    %v712 = vrot.slane %v707, %v711
    %v714 = vadd.f32 %v706, %v712
    %vm715 = vcmask 1024
    %716 = vst.msk [vmem:[%s9] sm:$0x3] %vm715, %v714
    // Predicated region
    $region50: #{crypto_predictor_forward.1} parent=1 // pred_check
      _
    $region51: #{crypto_predictor_forward.1} parent=1 // pred_check_branch
      %718 = sbr.rel (0) target = $region53
    $region52: #{crypto_predictor_forward.1} parent=1 // pred_region
      _
    $region53: #{crypto_predictor_forward.1} parent=1 // pred_fallthru
      _
    // Predicated region
    $region54: #{crypto_predictor_forward.1} parent=1 // pred_check
      _
    $region55: #{crypto_predictor_forward.1} parent=1 // pred_check_branch
      %720 = sbr.rel (0) target = $region57
    $region56: #{crypto_predictor_forward.1} parent=1 // pred_region
      _
    $region57: #{crypto_predictor_forward.1} parent=1 // pred_fallthru
      _
    %721 = vsyncpa [#allocation6], 1
    %722 = vsyncpa [#allocation8], 1

</llo_original>
